<compile_context>
chip_gen: v6e
topology: v6e:2x2x1
jax: 0.10.0
libtpu: 0.0.40
codegen_flags: <defaults>
</compile_context>

<pallas_src>
import jax
import jax.numpy as jnp
from jax.experimental import pallas as pl
from jax.experimental.pallas import tpu as pltpu

_LANE = 128
_SUBLANE = 8
_MIN_TILE = _LANE * _SUBLANE   # 1024 batch elems = one fully dense f32 vreg
_H = 10                        # hidden units


def _mlp_kernel(params_ref, x_ref, o_ref):
    """params_ref: SMEM f32[41]; x_ref: VMEM [2, TBr, 128]; o_ref: VMEM [TBr, 128].

    params layout: [w1[0,0..9], w1[1,0..9], b1[0..9], w2[0..9], b2]
    """
    x0 = x_ref[0]                      # [TBr, 128] feature 0, batch-dense
    x1 = x_ref[1]                      # [TBr, 128] feature 1, batch-dense
    acc = jnp.zeros_like(x0)
    for j in range(_H):                # unrolled over the 10 hidden units
        w0 = params_ref[j]             # scalar (SMEM) -> free scalar slot
        w1 = params_ref[_H + j]
        b1 = params_ref[2 * _H + j]
        w2 = params_ref[3 * _H + j]
        h = jnp.tanh(x0 * w0 + x1 * w1 + b1)   # VPU FMAs + EUP tanh
        acc = acc + w2 * h                      # fc2 weighted accumulation
    y = acc + params_ref[4 * _H]
    # sigmoid(y) == 0.5 * (tanh(0.5*y) + 1): single EUP transcendental.
    o_ref[...] = (0.5 * (jnp.tanh(0.5 * y) + 1.0)).astype(o_ref.dtype)


def neural_net_forward(x, w1, b1, w2, b2, *, block_b=131072):
    """x: [B, 2] float32 -> [B, 1] float32 (matches Neural_Net.forward).

    Weights use the [in, out] convention (i.e. torch fc1.weight.T):
      w1: [2, 10], b1: [10], w2: [10, 1], b2: [1]
    """
    B = x.shape[0]

    # Pad the batch to a dense-vreg multiple (8 sublanes x 128 lanes).
    bp0 = -(-B // _MIN_TILE) * _MIN_TILE
    # Tile size: as large as requested, rounded to a multiple of 1024 ...
    tb = max(_MIN_TILE, (min(block_b, bp0) // _MIN_TILE) * _MIN_TILE)
    # ... but keep >= 2 grid steps when the batch allows it, so the "parallel"
    # batch axis can be split across v7x's two TensorCores.
    if bp0 >= 2 * _MIN_TILE and tb > bp0 // 2:
        tb = max(_MIN_TILE, ((bp0 // 2) // _MIN_TILE) * _MIN_TILE)
    bp = -(-bp0 // tb) * tb
    rows = bp // _LANE
    tbr = tb // _LANE

    xf = jnp.asarray(x, jnp.float32)
    if bp != B:
        xf = jnp.pad(xf, ((0, bp - B), (0, 0)))
    # Dense feature-major slabs [2, rows, 128]: batch fills sublanes AND lanes.
    # pad + reshape + transpose fuse into one XLA copy before the kernel.
    xs = xf.reshape(rows, _LANE, 2).transpose(2, 0, 1)

    # All 41 parameters as one SMEM scalar-prefetch vector.
    w1f = jnp.asarray(w1, jnp.float32).reshape(2, _H)
    params = jnp.concatenate([
        w1f[0],
        w1f[1],
        jnp.asarray(b1, jnp.float32).reshape(_H),
        jnp.asarray(w2, jnp.float32).reshape(_H),
        jnp.asarray(b2, jnp.float32).reshape(1),
    ])

    grid_spec = pltpu.PrefetchScalarGridSpec(
        num_scalar_prefetch=1,
        grid=(bp // tb,),
        in_specs=[pl.BlockSpec((2, tbr, _LANE), lambda i, p: (0, i, 0))],
        out_specs=pl.BlockSpec((tbr, _LANE), lambda i, p: (i, 0)),
    )
    out = pl.pallas_call(
        _mlp_kernel,
        out_shape=jax.ShapeDtypeStruct((rows, _LANE), jnp.float32),
        grid_spec=grid_spec,
        compiler_params=pltpu.CompilerParams(
            dimension_semantics=("parallel",)),   # batch axis: megacore-shardable
    )(params, xs)

    # Back to the PyTorch-facing [B, 1] layout.
    return out.reshape(bp)[:B].reshape(B, 1)


def init_params(key):
    # Deterministic init mimicking nn.Linear's uniform(-1/sqrt(fan_in), ...).
    k1, k2, k3, k4 = jax.random.split(key, 4)
    lim1 = 1.0 / jnp.sqrt(2.0)
    lim2 = 1.0 / jnp.sqrt(10.0)
    w1 = jax.random.uniform(k1, (2, 10), jnp.float32, -lim1, lim1)   # [in, out]
    b1 = jax.random.uniform(k2, (10,), jnp.float32, -lim1, lim1)
    w2 = jax.random.uniform(k3, (10, 1), jnp.float32, -lim2, lim2)   # [in, out]
    b2 = jax.random.uniform(k4, (1,), jnp.float32, -lim2, lim2)
    return w1, b1, w2, b2


if __name__ == "__main__":
    key = jax.random.PRNGKey(0)
    kx, kp = jax.random.split(key)
    w1, b1, w2, b2 = init_params(kp)

    # Small spec-consistent batch, plus a multi-tile batch that exercises
    # padding and a >1-step grid.
    for B in (8, 2600):
        x = jax.random.normal(jax.random.fold_in(kx, B), (B, 2), jnp.float32)
        y = jax.block_until_ready(neural_net_forward(x, w1, b1, w2, b2))

        # Pure-JAX reference (same math as the PyTorch module).
        ref = jax.nn.sigmoid(jnp.tanh(x @ w1 + b1) @ w2 + b2)
        assert y.shape == (B, 1)
        assert jnp.allclose(y, ref, atol=2e-5), f"mismatch vs reference (B={B})"

    print("KERNEL_OK")
</pallas_src>

<mosaic_0001>
module attributes {stable_mosaic.version = 11 : i64} {
  func.func @_mlp_kernel(%arg0: i32, %arg1: memref<41xf32, #tpu.memory_space<smem>>, %arg2: memref<2x8x128xf32, #tpu.memory_space<vmem>>, %arg3: memref<8x128xf32, #tpu.memory_space<vmem>>) attributes {dimension_semantics = [#tpu.dimension_semantics<parallel>], iteration_bounds = array<i64: 1>, scalar_prefetch = 1 : i64, scratch_operands = 0 : i64, tpu.core_type = #tpu.core_type<tc>, window_params = [{transform_indices = @transform_0, window_bounds = array<i64: 2, 8, 128>}, {transform_indices = @transform_1, window_bounds = array<i64: 8, 128>}]} {
    %c0 = arith.constant 0 : index
    %c0_0 = arith.constant 0 : index
    %c0_1 = arith.constant 0 : index
    %0 = vector.load %arg2[%c0, %c0_0, %c0_1] : memref<2x8x128xf32, #tpu.memory_space<vmem>>, vector<1x8x128xf32>
    %1 = vector.shape_cast %0 : vector<1x8x128xf32> to vector<8x128xf32>
    %c1 = arith.constant 1 : index
    %c0_2 = arith.constant 0 : index
    %c0_3 = arith.constant 0 : index
    %2 = vector.load %arg2[%c1, %c0_2, %c0_3] : memref<2x8x128xf32, #tpu.memory_space<vmem>>, vector<1x8x128xf32>
    %3 = vector.shape_cast %2 : vector<1x8x128xf32> to vector<8x128xf32>
    %cst = arith.constant 0.000000e+00 : f32
    %4 = vector.broadcast %cst : f32 to vector<8x128xf32>
    %c0_4 = arith.constant 0 : index
    %5 = memref.load %arg1[%c0_4] : memref<41xf32, #tpu.memory_space<smem>>
    %c10 = arith.constant 10 : index
    %6 = memref.load %arg1[%c10] : memref<41xf32, #tpu.memory_space<smem>>
    %c20 = arith.constant 20 : index
    %7 = memref.load %arg1[%c20] : memref<41xf32, #tpu.memory_space<smem>>
    %c30 = arith.constant 30 : index
    %8 = memref.load %arg1[%c30] : memref<41xf32, #tpu.memory_space<smem>>
    %9 = vector.broadcast %5 : f32 to vector<8x128xf32>
    %10 = arith.mulf %1, %9 : vector<8x128xf32>
    %11 = vector.broadcast %6 : f32 to vector<8x128xf32>
    %12 = arith.mulf %3, %11 : vector<8x128xf32>
    %13 = arith.addf %10, %12 : vector<8x128xf32>
    %14 = vector.broadcast %7 : f32 to vector<8x128xf32>
    %15 = arith.addf %13, %14 : vector<8x128xf32>
    %16 = math.tanh %15 : vector<8x128xf32>
    %17 = vector.broadcast %8 : f32 to vector<8x128xf32>
    %18 = arith.mulf %17, %16 : vector<8x128xf32>
    %19 = arith.addf %4, %18 : vector<8x128xf32>
    %c1_5 = arith.constant 1 : index
    %20 = memref.load %arg1[%c1_5] : memref<41xf32, #tpu.memory_space<smem>>
    %c11 = arith.constant 11 : index
    %21 = memref.load %arg1[%c11] : memref<41xf32, #tpu.memory_space<smem>>
    %c21 = arith.constant 21 : index
    %22 = memref.load %arg1[%c21] : memref<41xf32, #tpu.memory_space<smem>>
    %c31 = arith.constant 31 : index
    %23 = memref.load %arg1[%c31] : memref<41xf32, #tpu.memory_space<smem>>
    %24 = vector.broadcast %20 : f32 to vector<8x128xf32>
    %25 = arith.mulf %1, %24 : vector<8x128xf32>
    %26 = vector.broadcast %21 : f32 to vector<8x128xf32>
    %27 = arith.mulf %3, %26 : vector<8x128xf32>
    %28 = arith.addf %25, %27 : vector<8x128xf32>
    %29 = vector.broadcast %22 : f32 to vector<8x128xf32>
    %30 = arith.addf %28, %29 : vector<8x128xf32>
    %31 = math.tanh %30 : vector<8x128xf32>
    %32 = vector.broadcast %23 : f32 to vector<8x128xf32>
    %33 = arith.mulf %32, %31 : vector<8x128xf32>
    %34 = arith.addf %19, %33 : vector<8x128xf32>
    %c2 = arith.constant 2 : index
    %35 = memref.load %arg1[%c2] : memref<41xf32, #tpu.memory_space<smem>>
    %c12 = arith.constant 12 : index
    %36 = memref.load %arg1[%c12] : memref<41xf32, #tpu.memory_space<smem>>
    %c22 = arith.constant 22 : index
    %37 = memref.load %arg1[%c22] : memref<41xf32, #tpu.memory_space<smem>>
    %c32 = arith.constant 32 : index
    %38 = memref.load %arg1[%c32] : memref<41xf32, #tpu.memory_space<smem>>
    %39 = vector.broadcast %35 : f32 to vector<8x128xf32>
    %40 = arith.mulf %1, %39 : vector<8x128xf32>
    %41 = vector.broadcast %36 : f32 to vector<8x128xf32>
    %42 = arith.mulf %3, %41 : vector<8x128xf32>
    %43 = arith.addf %40, %42 : vector<8x128xf32>
    %44 = vector.broadcast %37 : f32 to vector<8x128xf32>
    %45 = arith.addf %43, %44 : vector<8x128xf32>
    %46 = math.tanh %45 : vector<8x128xf32>
    %47 = vector.broadcast %38 : f32 to vector<8x128xf32>
    %48 = arith.mulf %47, %46 : vector<8x128xf32>
    %49 = arith.addf %34, %48 : vector<8x128xf32>
    %c3 = arith.constant 3 : index
    %50 = memref.load %arg1[%c3] : memref<41xf32, #tpu.memory_space<smem>>
    %c13 = arith.constant 13 : index
    %51 = memref.load %arg1[%c13] : memref<41xf32, #tpu.memory_space<smem>>
    %c23 = arith.constant 23 : index
    %52 = memref.load %arg1[%c23] : memref<41xf32, #tpu.memory_space<smem>>
    %c33 = arith.constant 33 : index
    %53 = memref.load %arg1[%c33] : memref<41xf32, #tpu.memory_space<smem>>
    %54 = vector.broadcast %50 : f32 to vector<8x128xf32>
    %55 = arith.mulf %1, %54 : vector<8x128xf32>
    %56 = vector.broadcast %51 : f32 to vector<8x128xf32>
    %57 = arith.mulf %3, %56 : vector<8x128xf32>
    %58 = arith.addf %55, %57 : vector<8x128xf32>
    %59 = vector.broadcast %52 : f32 to vector<8x128xf32>
    %60 = arith.addf %58, %59 : vector<8x128xf32>
    %61 = math.tanh %60 : vector<8x128xf32>
    %62 = vector.broadcast %53 : f32 to vector<8x128xf32>
    %63 = arith.mulf %62, %61 : vector<8x128xf32>
    %64 = arith.addf %49, %63 : vector<8x128xf32>
    %c4 = arith.constant 4 : index
    %65 = memref.load %arg1[%c4] : memref<41xf32, #tpu.memory_space<smem>>
    %c14 = arith.constant 14 : index
    %66 = memref.load %arg1[%c14] : memref<41xf32, #tpu.memory_space<smem>>
    %c24 = arith.constant 24 : index
    %67 = memref.load %arg1[%c24] : memref<41xf32, #tpu.memory_space<smem>>
    %c34 = arith.constant 34 : index
    %68 = memref.load %arg1[%c34] : memref<41xf32, #tpu.memory_space<smem>>
    %69 = vector.broadcast %65 : f32 to vector<8x128xf32>
    %70 = arith.mulf %1, %69 : vector<8x128xf32>
    %71 = vector.broadcast %66 : f32 to vector<8x128xf32>
    %72 = arith.mulf %3, %71 : vector<8x128xf32>
    %73 = arith.addf %70, %72 : vector<8x128xf32>
    %74 = vector.broadcast %67 : f32 to vector<8x128xf32>
    %75 = arith.addf %73, %74 : vector<8x128xf32>
    %76 = math.tanh %75 : vector<8x128xf32>
    %77 = vector.broadcast %68 : f32 to vector<8x128xf32>
    %78 = arith.mulf %77, %76 : vector<8x128xf32>
    %79 = arith.addf %64, %78 : vector<8x128xf32>
    %c5 = arith.constant 5 : index
    %80 = memref.load %arg1[%c5] : memref<41xf32, #tpu.memory_space<smem>>
    %c15 = arith.constant 15 : index
    %81 = memref.load %arg1[%c15] : memref<41xf32, #tpu.memory_space<smem>>
    %c25 = arith.constant 25 : index
    %82 = memref.load %arg1[%c25] : memref<41xf32, #tpu.memory_space<smem>>
    %c35 = arith.constant 35 : index
    %83 = memref.load %arg1[%c35] : memref<41xf32, #tpu.memory_space<smem>>
    %84 = vector.broadcast %80 : f32 to vector<8x128xf32>
    %85 = arith.mulf %1, %84 : vector<8x128xf32>
    %86 = vector.broadcast %81 : f32 to vector<8x128xf32>
    %87 = arith.mulf %3, %86 : vector<8x128xf32>
    %88 = arith.addf %85, %87 : vector<8x128xf32>
    %89 = vector.broadcast %82 : f32 to vector<8x128xf32>
    %90 = arith.addf %88, %89 : vector<8x128xf32>
    %91 = math.tanh %90 : vector<8x128xf32>
    %92 = vector.broadcast %83 : f32 to vector<8x128xf32>
    %93 = arith.mulf %92, %91 : vector<8x128xf32>
    %94 = arith.addf %79, %93 : vector<8x128xf32>
    %c6 = arith.constant 6 : index
    %95 = memref.load %arg1[%c6] : memref<41xf32, #tpu.memory_space<smem>>
    %c16 = arith.constant 16 : index
    %96 = memref.load %arg1[%c16] : memref<41xf32, #tpu.memory_space<smem>>
    %c26 = arith.constant 26 : index
    %97 = memref.load %arg1[%c26] : memref<41xf32, #tpu.memory_space<smem>>
    %c36 = arith.constant 36 : index
    %98 = memref.load %arg1[%c36] : memref<41xf32, #tpu.memory_space<smem>>
    %99 = vector.broadcast %95 : f32 to vector<8x128xf32>
    %100 = arith.mulf %1, %99 : vector<8x128xf32>
    %101 = vector.broadcast %96 : f32 to vector<8x128xf32>
    %102 = arith.mulf %3, %101 : vector<8x128xf32>
    %103 = arith.addf %100, %102 : vector<8x128xf32>
    %104 = vector.broadcast %97 : f32 to vector<8x128xf32>
    %105 = arith.addf %103, %104 : vector<8x128xf32>
    %106 = math.tanh %105 : vector<8x128xf32>
    %107 = vector.broadcast %98 : f32 to vector<8x128xf32>
    %108 = arith.mulf %107, %106 : vector<8x128xf32>
    %109 = arith.addf %94, %108 : vector<8x128xf32>
    %c7 = arith.constant 7 : index
    %110 = memref.load %arg1[%c7] : memref<41xf32, #tpu.memory_space<smem>>
    %c17 = arith.constant 17 : index
    %111 = memref.load %arg1[%c17] : memref<41xf32, #tpu.memory_space<smem>>
    %c27 = arith.constant 27 : index
    %112 = memref.load %arg1[%c27] : memref<41xf32, #tpu.memory_space<smem>>
    %c37 = arith.constant 37 : index
    %113 = memref.load %arg1[%c37] : memref<41xf32, #tpu.memory_space<smem>>
    %114 = vector.broadcast %110 : f32 to vector<8x128xf32>
    %115 = arith.mulf %1, %114 : vector<8x128xf32>
    %116 = vector.broadcast %111 : f32 to vector<8x128xf32>
    %117 = arith.mulf %3, %116 : vector<8x128xf32>
    %118 = arith.addf %115, %117 : vector<8x128xf32>
    %119 = vector.broadcast %112 : f32 to vector<8x128xf32>
    %120 = arith.addf %118, %119 : vector<8x128xf32>
    %121 = math.tanh %120 : vector<8x128xf32>
    %122 = vector.broadcast %113 : f32 to vector<8x128xf32>
    %123 = arith.mulf %122, %121 : vector<8x128xf32>
    %124 = arith.addf %109, %123 : vector<8x128xf32>
    %c8 = arith.constant 8 : index
    %125 = memref.load %arg1[%c8] : memref<41xf32, #tpu.memory_space<smem>>
    %c18 = arith.constant 18 : index
    %126 = memref.load %arg1[%c18] : memref<41xf32, #tpu.memory_space<smem>>
    %c28 = arith.constant 28 : index
    %127 = memref.load %arg1[%c28] : memref<41xf32, #tpu.memory_space<smem>>
    %c38 = arith.constant 38 : index
    %128 = memref.load %arg1[%c38] : memref<41xf32, #tpu.memory_space<smem>>
    %129 = vector.broadcast %125 : f32 to vector<8x128xf32>
    %130 = arith.mulf %1, %129 : vector<8x128xf32>
    %131 = vector.broadcast %126 : f32 to vector<8x128xf32>
    %132 = arith.mulf %3, %131 : vector<8x128xf32>
    %133 = arith.addf %130, %132 : vector<8x128xf32>
    %134 = vector.broadcast %127 : f32 to vector<8x128xf32>
    %135 = arith.addf %133, %134 : vector<8x128xf32>
    %136 = math.tanh %135 : vector<8x128xf32>
    %137 = vector.broadcast %128 : f32 to vector<8x128xf32>
    %138 = arith.mulf %137, %136 : vector<8x128xf32>
    %139 = arith.addf %124, %138 : vector<8x128xf32>
    %c9 = arith.constant 9 : index
    %140 = memref.load %arg1[%c9] : memref<41xf32, #tpu.memory_space<smem>>
    %c19 = arith.constant 19 : index
    %141 = memref.load %arg1[%c19] : memref<41xf32, #tpu.memory_space<smem>>
    %c29 = arith.constant 29 : index
    %142 = memref.load %arg1[%c29] : memref<41xf32, #tpu.memory_space<smem>>
    %c39 = arith.constant 39 : index
    %143 = memref.load %arg1[%c39] : memref<41xf32, #tpu.memory_space<smem>>
    %144 = vector.broadcast %140 : f32 to vector<8x128xf32>
    %145 = arith.mulf %1, %144 : vector<8x128xf32>
    %146 = vector.broadcast %141 : f32 to vector<8x128xf32>
    %147 = arith.mulf %3, %146 : vector<8x128xf32>
    %148 = arith.addf %145, %147 : vector<8x128xf32>
    %149 = vector.broadcast %142 : f32 to vector<8x128xf32>
    %150 = arith.addf %148, %149 : vector<8x128xf32>
    %151 = math.tanh %150 : vector<8x128xf32>
    %152 = vector.broadcast %143 : f32 to vector<8x128xf32>
    %153 = arith.mulf %152, %151 : vector<8x128xf32>
    %154 = arith.addf %139, %153 : vector<8x128xf32>
    %c40 = arith.constant 40 : index
    %155 = memref.load %arg1[%c40] : memref<41xf32, #tpu.memory_space<smem>>
    %156 = vector.broadcast %155 : f32 to vector<8x128xf32>
    %157 = arith.addf %154, %156 : vector<8x128xf32>
    %cst_6 = arith.constant 5.000000e-01 : f32
    %158 = vector.broadcast %cst_6 : f32 to vector<8x128xf32>
    %159 = arith.mulf %158, %157 : vector<8x128xf32>
    %160 = math.tanh %159 : vector<8x128xf32>
    %cst_7 = arith.constant 1.000000e+00 : f32
    %161 = vector.broadcast %cst_7 : f32 to vector<8x128xf32>
    %162 = arith.addf %160, %161 : vector<8x128xf32>
    %cst_8 = arith.constant 5.000000e-01 : f32
    %163 = vector.broadcast %cst_8 : f32 to vector<8x128xf32>
    %164 = arith.mulf %163, %162 : vector<8x128xf32>
    %c0_9 = arith.constant 0 : index
    %c0_10 = arith.constant 0 : index
    %165 = vector.load %arg3[%c0_9, %c0_10] : memref<8x128xf32, #tpu.memory_space<vmem>>, vector<8x128xf32>
    tpu.vector_store %arg3[%c0_9, %c0_10], %164 {strides = array<i32>} : memref<8x128xf32, #tpu.memory_space<vmem>>, vector<8x128xf32>,
    return
  }
  func.func @transform_0(%arg0: i32, %arg1: memref<41xf32, #tpu.memory_space<smem>>) -> (i32, i32, i32) {
    %c0_i32 = arith.constant 0 : i32
    %c0_i32_0 = arith.constant 0 : i32
    %c0_i32_1 = arith.constant 0 : i32
    return %c0_i32, %arg0, %c0_i32_0 : i32, i32, i32
  }
  func.func @transform_1(%arg0: i32, %arg1: memref<41xf32, #tpu.memory_space<smem>>) -> (i32, i32) {
    %c0_i32 = arith.constant 0 : i32
    %c0_i32_0 = arith.constant 0 : i32
    return %arg0, %c0_i32 : i32, i32
  }
}

</mosaic_0001>

<llo_original>
// kernel: tpu_custom_call.1
$region0: #{tpu_custom_call.1}
  #allocation0 [shape = 'u32[]', space=smem, size = 0x4, offset = 0x4, fixed_abs, tag = 'smem constant byte address 0x4 - core index']
  #allocation1 [shape = 'u32[144,128]{1,0:T(1,128)}', space=vmem, size = 0x12000, scoped, tag = 'internal scratch']
  #allocation2 [shape = 's32[1]{0}', space=sflag, size = 0x4, scoped, tag = 'scoped memory for tpu_custom_call.1']
  #allocation3 [shape = 'u8[512]{0}', space=smem, size = 0x200, scoped, tag = 'prefetched SMEM operand 0']
  %s0 = inlined_call_operand.hbm [shape: f32[41], index: 0, kind: input, shape index: {}]
  %s1 = inlined_call_operand.hbm [shape: f32[2,8,128], index: 1, kind: input, shape index: {}]
  %s2 = inlined_call_operand.hbm [shape: f32[8,128], index: 2, kind: output, shape index: {}]
  %s3 = sld [smem:[#allocation0]]
  $region18: #{tpu_custom_call.1} parent=0
    _
  %s5 = ssub.s32 1, %s3
  %s6 = scalar_select 0, %s5, %s3
  %8 = dma.hbm_to_smem %s0, 16, [#allocation3], [#allocation2]
  %9 = dma.done [#allocation2], 16
  %10 = sfence
  $region1: #{tpu_custom_call.1} parent=0
    #allocation4 [shape = 'u8[8192]{0}', space=vmem, size = 0x2000, scoped, tag = 'input window, operand 1, single buffered']
    #allocation5 [shape = 's32[1]{0}', space=sflag, size = 0x4, scoped, tag = 'scoped memory for tpu_custom_call.1']
    #allocation6 [shape = 's32[1]{0}', space=sflag, size = 0x4, scoped, tag = 'scoped memory for tpu_custom_call.1']
    #allocation7 [shape = 'u8[4096]{0}', space=vmem, size = 0x1000, scoped, tag = 'output window, operand 0, single buffered']
    %11 = vsyncpa [#allocation5], 0
    %12 = vsyncpa [#allocation6], 0
    // Predicated region
    $region2: #{tpu_custom_call.1} parent=1 // pred_check
      _
    $region3: #{tpu_custom_call.1} parent=1 // pred_check_branch
      %14 = sbr.rel (0) target = $region5
    $region4: #{tpu_custom_call.1} parent=1 // pred_region
      %s16 = ssub.s32 256, 256
      %17 = vsyncadd [#allocation5], %s16
      %s18 = sshll.u32 [#allocation4], 4
      %s19 = int_to_ptr.vmem [resolvable:$true] %s18
      %24 = dma.hbm_to_vmem [thread:$0]  %s1, 256, %s19, [#allocation5], 128, 128, 8
    $region5: #{tpu_custom_call.1} parent=1 // pred_fallthru
      _
    // Predicated region
    $region6: #{tpu_custom_call.1} parent=1 // pred_check
      _
    $region7: #{tpu_custom_call.1} parent=1 // pred_check_branch
      %26 = sbr.rel (0) target = $region9
    $region8: #{tpu_custom_call.1} parent=1 // pred_region
      %27 = dma.done [#allocation5], 256
    $region9: #{tpu_custom_call.1} parent=1 // pred_fallthru
      _
    %v28 = vld [vmem:[#allocation4] sm:$0xff]
    %s29 = scalar_lea.vmem [#allocation4], 8
    %v30 = vld [vmem:[%s29] sm:$0xff]
    %s31 = sld [smem:[#allocation3]]
    %s32 = sld [smem:[#allocation3 + $0xa]]
    %s33 = sld [smem:[#allocation3 + $0x14]]
    %s34 = sld [smem:[#allocation3 + $0x1e]]
    %v35 = vstv %s31
    %v36 = vmul.f32 %v28, %v35
    %v37 = vstv %s32
    %v38 = vmul.f32 %v30, %v37
    %v39 = vadd.f32 %v36, %v38
    %v40 = vstv %s33
    %v41 = vadd.f32 %v39, %v40
    %v42 = vtanh.pop %v41
    %v43 = vstv %s34
    %v44 = vmul.f32 %v43, %v42
    %v45 = vadd.f32 %v44, 0.0
    %s46 = sld [smem:[#allocation3 + $0x1]]
    %s47 = sld [smem:[#allocation3 + $0xb]]
    %s48 = sld [smem:[#allocation3 + $0x15]]
    %s49 = sld [smem:[#allocation3 + $0x1f]]
    %v50 = vstv %s46
    %v51 = vmul.f32 %v28, %v50
    %v52 = vstv %s47
    %v53 = vmul.f32 %v30, %v52
    %v54 = vadd.f32 %v51, %v53
    %v55 = vstv %s48
    %v56 = vadd.f32 %v54, %v55
    %v57 = vtanh.pop %v56
    %v58 = vstv %s49
    %v59 = vmul.f32 %v58, %v57
    %v60 = vadd.f32 %v45, %v59
    %s61 = sld [smem:[#allocation3 + $0x2]]
    %s62 = sld [smem:[#allocation3 + $0xc]]
    %s63 = sld [smem:[#allocation3 + $0x16]]
    %s64 = sld [smem:[#allocation3 + $0x20]]
    %v65 = vstv %s61
    %v66 = vmul.f32 %v28, %v65
    %v67 = vstv %s62
    %v68 = vmul.f32 %v30, %v67
    %v69 = vadd.f32 %v66, %v68
    %v70 = vstv %s63
    %v71 = vadd.f32 %v69, %v70
    %v72 = vtanh.pop %v71
    %v73 = vstv %s64
    %v74 = vmul.f32 %v73, %v72
    %v75 = vadd.f32 %v60, %v74
    %s76 = sld [smem:[#allocation3 + $0x3]]
    %s77 = sld [smem:[#allocation3 + $0xd]]
    %s78 = sld [smem:[#allocation3 + $0x17]]
    %s79 = sld [smem:[#allocation3 + $0x21]]
    %v80 = vstv %s76
    %v81 = vmul.f32 %v28, %v80
    %v82 = vstv %s77
    %v83 = vmul.f32 %v30, %v82
    %v84 = vadd.f32 %v81, %v83
    %v85 = vstv %s78
    %v86 = vadd.f32 %v84, %v85
    %v87 = vtanh.pop %v86
    %v88 = vstv %s79
    %v89 = vmul.f32 %v88, %v87
    %v90 = vadd.f32 %v75, %v89
    %s91 = sld [smem:[#allocation3 + $0x4]]
    %s92 = sld [smem:[#allocation3 + $0xe]]
    %s93 = sld [smem:[#allocation3 + $0x18]]
    %s94 = sld [smem:[#allocation3 + $0x22]]
    %v95 = vstv %s91
    %v96 = vmul.f32 %v28, %v95
    %v97 = vstv %s92
    %v98 = vmul.f32 %v30, %v97
    %v99 = vadd.f32 %v96, %v98
    %v100 = vstv %s93
    %v101 = vadd.f32 %v99, %v100
    %v102 = vtanh.pop %v101
    %v103 = vstv %s94
    %v104 = vmul.f32 %v103, %v102
    %v105 = vadd.f32 %v90, %v104
    %s106 = sld [smem:[#allocation3 + $0x5]]
    %s107 = sld [smem:[#allocation3 + $0xf]]
    %s108 = sld [smem:[#allocation3 + $0x19]]
    %s109 = sld [smem:[#allocation3 + $0x23]]
    %v110 = vstv %s106
    %v111 = vmul.f32 %v28, %v110
    %v112 = vstv %s107
    %v113 = vmul.f32 %v30, %v112
    %v114 = vadd.f32 %v111, %v113
    %v115 = vstv %s108
    %v116 = vadd.f32 %v114, %v115
    %v117 = vtanh.pop %v116
    %v118 = vstv %s109
    %v119 = vmul.f32 %v118, %v117
    %v120 = vadd.f32 %v105, %v119
    %s121 = sld [smem:[#allocation3 + $0x6]]
    %s122 = sld [smem:[#allocation3 + $0x10]]
    %s123 = sld [smem:[#allocation3 + $0x1a]]
    %s124 = sld [smem:[#allocation3 + $0x24]]
    %v125 = vstv %s121
    %v126 = vmul.f32 %v28, %v125
    %v127 = vstv %s122
    %v128 = vmul.f32 %v30, %v127
    %v129 = vadd.f32 %v126, %v128
    %v130 = vstv %s123
    %v131 = vadd.f32 %v129, %v130
    %v132 = vtanh.pop %v131
    %v133 = vstv %s124
    %v134 = vmul.f32 %v133, %v132
    %v135 = vadd.f32 %v120, %v134
    %s136 = sld [smem:[#allocation3 + $0x7]]
    %s137 = sld [smem:[#allocation3 + $0x11]]
    %s138 = sld [smem:[#allocation3 + $0x1b]]
    %s139 = sld [smem:[#allocation3 + $0x25]]
    %v140 = vstv %s136
    %v141 = vmul.f32 %v28, %v140
    %v142 = vstv %s137
    %v143 = vmul.f32 %v30, %v142
    %v144 = vadd.f32 %v141, %v143
    %v145 = vstv %s138
    %v146 = vadd.f32 %v144, %v145
    %v147 = vtanh.pop %v146
    %v148 = vstv %s139
    %v149 = vmul.f32 %v148, %v147
    %v150 = vadd.f32 %v135, %v149
    %s151 = sld [smem:[#allocation3 + $0x8]]
    %s152 = sld [smem:[#allocation3 + $0x12]]
    %s153 = sld [smem:[#allocation3 + $0x1c]]
    %s154 = sld [smem:[#allocation3 + $0x26]]
    %v155 = vstv %s151
    %v156 = vmul.f32 %v28, %v155
    %v157 = vstv %s152
    %v158 = vmul.f32 %v30, %v157
    %v159 = vadd.f32 %v156, %v158
    %v160 = vstv %s153
    %v161 = vadd.f32 %v159, %v160
    %v162 = vtanh.pop %v161
    %v163 = vstv %s154
    %v164 = vmul.f32 %v163, %v162
    %v165 = vadd.f32 %v150, %v164
    %s166 = sld [smem:[#allocation3 + $0x9]]
    %s167 = sld [smem:[#allocation3 + $0x13]]
    %s168 = sld [smem:[#allocation3 + $0x1d]]
    %s169 = sld [smem:[#allocation3 + $0x27]]
    %v170 = vstv %s166
    %v171 = vmul.f32 %v28, %v170
    %v172 = vstv %s167
    %v173 = vmul.f32 %v30, %v172
    %v174 = vadd.f32 %v171, %v173
    %v175 = vstv %s168
    %v176 = vadd.f32 %v174, %v175
    %v177 = vtanh.pop %v176
    %v178 = vstv %s169
    %v179 = vmul.f32 %v178, %v177
    %v180 = vadd.f32 %v165, %v179
    %s181 = sld [smem:[#allocation3 + $0x28]]
    %v182 = vstv %s181
    %v183 = vadd.f32 %v180, %v182
    %v184 = vmul.f32 %v183, 0.5
    %v185 = vtanh.pop %v184
    %v186 = vadd.f32 %v185, 1.0
    %v187 = vmul.f32 %v186, 0.5
    %188 = vst [vmem:[#allocation7] sm:$0xff] %v187
    // Predicated region
    $region10: #{tpu_custom_call.1} parent=1 // pred_check
      _
    $region11: #{tpu_custom_call.1} parent=1 // pred_check_branch
      %190 = sbr.rel (0) target = $region13
    $region12: #{tpu_custom_call.1} parent=1 // pred_region
      %s192 = ssub.s32 128, 128
      %193 = vsyncadd [#allocation6], %s192
      %s195 = sshll.u32 [#allocation7], 4
      %s196 = int_to_ptr.vmem [resolvable:$true] %s195
      %198 = dma.vmem_to_hbm [thread:$0]  %s196, 128, %s2, [#allocation6]
    $region13: #{tpu_custom_call.1} parent=1 // pred_fallthru
      _
    // Predicated region
    $region14: #{tpu_custom_call.1} parent=1 // pred_check
      _
    $region15: #{tpu_custom_call.1} parent=1 // pred_check_branch
      %200 = sbr.rel (0) target = $region17
    $region16: #{tpu_custom_call.1} parent=1 // pred_region
      %201 = dma.done [#allocation6], 128
    $region17: #{tpu_custom_call.1} parent=1 // pred_fallthru
      _
    %202 = vsyncpa [#allocation5], 1
    %203 = vsyncpa [#allocation6], 1

</llo_original>
